<compile_context>
chip_gen: v7x
topology: tpu7x:2x2x1
jax: 0.10.0
libtpu: 0.0.40
codegen_flags: <defaults>
</compile_context>

<pallas_src>
import jax
import jax.numpy as jnp
from jax import lax
from jax.experimental import pallas as pl
from jax.experimental.pallas import tpu as pltpu


# --------------------------------------------------------------------------- #
# Kernel
# --------------------------------------------------------------------------- #
def _critic_kernel(obs_ref, w1_ref, b1_ref, w2_ref, b2_ref, w3_ref, b3_ref,
                   out_ref):
    # Cast the streamed obs tile in-kernel (free) instead of in the wrapper.
    x = obs_ref[...].astype(w1_ref.dtype)                          # (TB, D)
    # preprocess_net layer 1 (MXU, f32 accumulation)
    h1 = jnp.dot(x, w1_ref[...], preferred_element_type=jnp.float32)
    h1 = jnp.maximum(h1 + b1_ref[...], 0.0)                        # ReLU in f32 (VPU)
    # preprocess_net layer 2 -> "hidden"
    h2 = jnp.dot(h1.astype(w2_ref.dtype), w2_ref[...],
                 preferred_element_type=jnp.float32)
    h2 = jnp.maximum(h2 + b2_ref[...], 0.0)                        # (TB, H2p) f32
    # self.last: Linear(H -> last_size), computed as w3 @ hidden^T so that the
    # result (last_size, TB) is lane-dense (TB on lanes -> unmasked stores).
    v = lax.dot_general(w3_ref[...], h2, (((1,), (1,)), ((), ())),
                        preferred_element_type=jnp.float32)        # (last_size, TB)
    out_ref[...] = (v + b3_ref[...])[None].astype(out_ref.dtype)   # (1, last_size, TB)


# --------------------------------------------------------------------------- #
# Tiling / VMEM policy
# --------------------------------------------------------------------------- #
def _round_up(x, m):
    return ((x + m - 1) // m) * m


def _vmem_budget_bytes():
    """Per-generation VMEM budget: ~3/4 of physical, capped at 100 MiB.
    v5e/v6e (128 MiB physical) -> 96 MiB, v7x (64 MiB physical) -> 48 MiB."""
    cap = 128 * 1024 * 1024
    try:
        cap = int(getattr(pltpu.get_tpu_info(), "vmem_capacity_bytes", cap))
    except Exception:
        pass
    return int(min(cap * 3 // 4, 100 * 1024 * 1024))


def _pick_batch_tile(B, per_row_bytes, fixed_bytes, budget_bytes):
    """Largest batch tile that fits the VMEM budget (bytes-based, no row cap),
    forcing >= 2 grid steps so the batch axis can shard across both v7x
    TensorCores (harmless on single-TC v5e/v6e)."""
    if B <= 16:
        return int(B)                               # block == full dim is always legal
    avail = int(budget_bytes * 0.85) - int(fixed_bytes)
    tb = max(avail, per_row_bytes) // per_row_bytes
    tb = min(tb, 65536)                             # sanity cap
    tb = min(tb, _round_up(pl.cdiv(B, 2), 16))      # >= 2 grid steps
    if tb >= 1024:
        tb = (tb // 1024) * 1024
    elif tb >= 128:
        tb = (tb // 128) * 128
    else:
        tb = (tb // 16) * 16                        # sublane-legal for f32 and bf16
    return int(max(tb, 16))


def _resident_spec(shape):
    """Full-array VMEM-resident block (constant index map). Single-buffered:
    the block index never changes, so a second buffer would only waste VMEM."""
    imap = lambda i: (0,) * len(shape)
    try:
        return pl.BlockSpec(shape, imap, pipeline_mode=pl.Buffered(1))
    except TypeError:   # BlockSpec without pipeline_mode support
        return pl.BlockSpec(shape, imap)


# --------------------------------------------------------------------------- #
# Parameter prep (one-time) and forward wrapper
# --------------------------------------------------------------------------- #
def prepare_params(params, *, compute_dtype=jnp.float32):
    """One-time prep: zero-pad hidden dims to the 128-lane width (numerically
    exact) and persistently store the two large matmul weights in
    `compute_dtype` (e.g. bf16). Biases and the last layer stay f32."""
    w1, b1 = params["w1"], params["b1"]
    w2, b2 = params["w2"], params["b2"]
    w3, b3 = params["w3"], params["b3"]
    h1, h2 = w1.shape[1], w2.shape[1]
    h1p, h2p = _round_up(h1, 128), _round_up(h2, 128)
    w1 = jnp.pad(w1, ((0, 0), (0, h1p - h1))).astype(compute_dtype)
    b1 = jnp.pad(b1.reshape(1, -1), ((0, 0), (0, h1p - h1))).astype(jnp.float32)
    w2 = jnp.pad(w2, ((0, h1p - h1), (0, h2p - h2))).astype(compute_dtype)
    b2 = jnp.pad(b2.reshape(1, -1), ((0, 0), (0, h2p - h2))).astype(jnp.float32)
    w3 = jnp.pad(w3, ((0, 0), (0, h2p - h2))).astype(jnp.float32)
    b3 = b3.reshape(-1, 1).astype(jnp.float32)          # (last_size, 1)
    return dict(w1=w1, b1=b1, w2=w2, b2=b2, w3=w3, b3=b3)


def custom_critic_forward(obs, prepared, *, batch_tile=None, vmem_budget_bytes=None):
    """obs: (B, obs_dim). prepared: prepare_params(...). Returns (B, last_size) f32."""
    w1, b1 = prepared["w1"], prepared["b1"]
    w2, b2 = prepared["w2"], prepared["b2"]
    w3, b3 = prepared["w3"], prepared["b3"]
    B, obs_dim = obs.shape
    h1p, h2p = w1.shape[1], w2.shape[1]
    last_size = w3.shape[0]

    budget = int(vmem_budget_bytes) if vmem_budget_bytes is not None else _vmem_budget_bytes()
    fixed = sum(int(a.size) * a.dtype.itemsize for a in (w1, b1, w2, b2, w3, b3))
    per_row = (2 * obs_dim * obs.dtype.itemsize       # double-buffered obs tile
               + 4 * (h1p + h2p)                      # h1 / h2 f32 intermediates
               + w2.dtype.itemsize * h1p              # cast copy of h1 fed to MXU
               + 2 * 4 * last_size                    # double-buffered output tile
               + 32)                                  # slack
    TB = int(batch_tile) if batch_tile is not None else \
        _pick_batch_tile(B, per_row, fixed, budget)
    num_tiles = pl.cdiv(B, TB)

    flops = 2 * B * (obs_dim * h1p + h1p * h2p + h2p * last_size)
    bytes_accessed = int(B * obs_dim * obs.dtype.itemsize + fixed + B * last_size * 4)
    cost = pl.CostEstimate(flops=int(flops), transcendentals=0,
                           bytes_accessed=bytes_accessed)

    out = pl.pallas_call(
        _critic_kernel,
        # Lane-dense output layout (last_size, TB) per tile; un-transposed below.
        out_shape=jax.ShapeDtypeStruct((num_tiles, last_size, TB), jnp.float32),
        grid=(num_tiles,),
        in_specs=[pl.BlockSpec((TB, obs_dim), lambda i: (i, 0)),   # streamed obs tiles
                  _resident_spec(w1.shape), _resident_spec(b1.shape),
                  _resident_spec(w2.shape), _resident_spec(b2.shape),
                  _resident_spec(w3.shape), _resident_spec(b3.shape)],
        out_specs=pl.BlockSpec((1, last_size, TB), lambda i: (i, 0, 0)),
        compiler_params=pltpu.CompilerParams(
            dimension_semantics=("parallel",),        # shard batch tiles over v7x TCs
            vmem_limit_bytes=budget),
        cost_estimate=cost,
    )(obs, w1, b1, w2, b2, w3, b3)

    # (num_tiles, last_size, TB) -> (num_tiles*TB, last_size); drop padded rows
    # (garbage from out-of-range obs rows in the partial last tile).
    out = jnp.swapaxes(out, 1, 2).reshape(num_tiles * TB, last_size)
    return out[:B]


# --------------------------------------------------------------------------- #
# Init + pure-JAX reference
# --------------------------------------------------------------------------- #
def init_params(key, obs_dim, hidden_dim, last_size):
    """PyTorch nn.Linear-style init: U(-1/sqrt(fan_in), +1/sqrt(fan_in)).
    w1/w2 stored (in, out) so y = x @ W + b; w3 stored (out, in) like PyTorch."""
    ks = jax.random.split(key, 6)

    def lin(kw, kb, fan_in, w_shape, b_shape):
        bound = 1.0 / float(fan_in) ** 0.5
        w = jax.random.uniform(kw, w_shape, jnp.float32, -bound, bound)
        b = jax.random.uniform(kb, b_shape, jnp.float32, -bound, bound)
        return w, b

    w1, b1 = lin(ks[0], ks[1], obs_dim, (obs_dim, hidden_dim), (hidden_dim,))
    w2, b2 = lin(ks[2], ks[3], hidden_dim, (hidden_dim, hidden_dim), (hidden_dim,))
    w3, b3 = lin(ks[4], ks[5], hidden_dim, (last_size, hidden_dim), (last_size,))
    return dict(w1=w1, b1=b1, w2=w2, b2=b2, w3=w3, b3=b3)


def _reference_forward(obs, p):
    h1 = jnp.maximum(obs @ p["w1"] + p["b1"], 0.0)
    h2 = jnp.maximum(h1 @ p["w2"] + p["b2"], 0.0)
    return h2 @ p["w3"].T + p["b3"]


# --------------------------------------------------------------------------- #
# Self-test
# --------------------------------------------------------------------------- #
if __name__ == "__main__":
    key = jax.random.PRNGKey(0)
    k_params, k1, k2, k3 = jax.random.split(key, 4)

    OBS_DIM, HIDDEN, LAST = 16, 64, 1
    params = init_params(k_params, OBS_DIM, HIDDEN, LAST)
    prepared_f32 = prepare_params(params)                              # padded, f32
    prepared_bf16 = prepare_params(params, compute_dtype=jnp.bfloat16)  # padded, bf16 w1/w2

    fwd = jax.jit(custom_critic_forward,
                  static_argnames=("batch_tile", "vmem_budget_bytes"))

    # 1) Tiny batch, single tile, f32.
    obs1 = jax.random.normal(k1, (8, OBS_DIM), jnp.float32)
    v1 = jax.block_until_ready(fwd(obs1, prepared_f32))
    assert v1.shape == (8, LAST), v1.shape
    assert jnp.allclose(v1, _reference_forward(obs1, params), atol=1e-4, rtol=1e-4)

    # 2) Multi-tile grid (auto tile picker, >=2 grid steps), f32.
    obs2 = jax.random.normal(k2, (384, OBS_DIM), jnp.float32)
    v2 = jax.block_until_ready(fwd(obs2, prepared_f32))
    assert v2.shape == (384, LAST), v2.shape
    assert jnp.allclose(v2, _reference_forward(obs2, params), atol=1e-4, rtol=1e-4)

    # 3) Non-divisible tail tile (B % TB != 0), explicit tile size.
    obs3 = jax.random.normal(k3, (200, OBS_DIM), jnp.float32)
    v3 = jax.block_until_ready(fwd(obs3, prepared_f32, batch_tile=128))
    assert v3.shape == (200, LAST), v3.shape
    assert jnp.allclose(v3, _reference_forward(obs3, params), atol=1e-4, rtol=1e-4)

    # 4) Persistent bf16 weights; obs streamed f32 and cast in-kernel.
    v2b = jax.block_until_ready(fwd(obs2, prepared_bf16))
    assert v2b.shape == (384, LAST), v2b.shape
    assert jnp.allclose(v2b, _reference_forward(obs2, params), atol=5e-2, rtol=5e-2)

    print("KERNEL_OK")
</pallas_src>

<mosaic_0001>
module attributes {stable_mosaic.version = 11 : i64} {
  func.func @_critic_kernel(%arg0: i32, %arg1: memref<8x16xf32, #tpu.memory_space<vmem>>, %arg2: memref<16x128xf32, #tpu.memory_space<vmem>>, %arg3: memref<1x128xf32, #tpu.memory_space<vmem>>, %arg4: memref<128x128xf32, #tpu.memory_space<vmem>>, %arg5: memref<1x128xf32, #tpu.memory_space<vmem>>, %arg6: memref<1x128xf32, #tpu.memory_space<vmem>>, %arg7: memref<1x1xf32, #tpu.memory_space<vmem>>, %arg8: memref<1x1x8xf32, #tpu.memory_space<vmem>>) attributes {dimension_semantics = [#tpu.dimension_semantics<parallel>], iteration_bounds = array<i64: 1>, scalar_prefetch = 0 : i64, scratch_operands = 0 : i64, tpu.core_type = #tpu.core_type<tc>, window_params = [{transform_indices = @transform_0, window_bounds = array<i64: 8, 16>}, {pipeline_mode = #tpu.pipeline_mode<synchronous>, transform_indices = @transform_1, window_bounds = array<i64: 16, 128>}, {pipeline_mode = #tpu.pipeline_mode<synchronous>, transform_indices = @transform_2, window_bounds = array<i64: 1, 128>}, {pipeline_mode = #tpu.pipeline_mode<synchronous>, transform_indices = @transform_3, window_bounds = array<i64: 128, 128>}, {pipeline_mode = #tpu.pipeline_mode<synchronous>, transform_indices = @transform_4, window_bounds = array<i64: 1, 128>}, {pipeline_mode = #tpu.pipeline_mode<synchronous>, transform_indices = @transform_5, window_bounds = array<i64: 1, 128>}, {pipeline_mode = #tpu.pipeline_mode<synchronous>, transform_indices = @transform_6, window_bounds = array<i64: 1, 1>}, {transform_indices = @transform_7, window_bounds = array<i64: 1, 1, 8>}]} {
    %c0 = arith.constant 0 : index
    %c0_0 = arith.constant 0 : index
    %0 = vector.load %arg1[%c0, %c0_0] : memref<8x16xf32, #tpu.memory_space<vmem>>, vector<8x16xf32>
    %c0_1 = arith.constant 0 : index
    %c0_2 = arith.constant 0 : index
    %1 = vector.load %arg2[%c0_1, %c0_2] : memref<16x128xf32, #tpu.memory_space<vmem>>, vector<16x128xf32>
    %cst = arith.constant dense<0.000000e+00> : vector<8x128xf32>
    %2 = tpu.matmul %0, %1, %cst {dimension_numbers = #tpu.dot_dimension_numbers<[1], [0], [0], [1], [0, 0, 1, 1], [], []>} : vector<8x16xf32>, vector<16x128xf32>, vector<8x128xf32> -> vector<8x128xf32>
    %c0_3 = arith.constant 0 : index
    %c0_4 = arith.constant 0 : index
    %3 = vector.load %arg3[%c0_3, %c0_4] : memref<1x128xf32, #tpu.memory_space<vmem>>, vector<1x128xf32>
    %4 = vector.broadcast %3 : vector<1x128xf32> to vector<8x128xf32>
    %5 = arith.addf %2, %4 : vector<8x128xf32>
    %cst_5 = arith.constant 0.000000e+00 : f32
    %6 = vector.broadcast %cst_5 : f32 to vector<8x128xf32>
    %7 = arith.maximumf %5, %6 : vector<8x128xf32>
    %c0_6 = arith.constant 0 : index
    %c0_7 = arith.constant 0 : index
    %8 = vector.load %arg4[%c0_6, %c0_7] : memref<128x128xf32, #tpu.memory_space<vmem>>, vector<128x128xf32>
    %cst_8 = arith.constant dense<0.000000e+00> : vector<8x128xf32>
    %9 = tpu.matmul %7, %8, %cst_8 {dimension_numbers = #tpu.dot_dimension_numbers<[1], [0], [0], [1], [0, 0, 1, 1], [], []>} : vector<8x128xf32>, vector<128x128xf32>, vector<8x128xf32> -> vector<8x128xf32>
    %c0_9 = arith.constant 0 : index
    %c0_10 = arith.constant 0 : index
    %10 = vector.load %arg5[%c0_9, %c0_10] : memref<1x128xf32, #tpu.memory_space<vmem>>, vector<1x128xf32>
    %11 = vector.broadcast %10 : vector<1x128xf32> to vector<8x128xf32>
    %12 = arith.addf %9, %11 : vector<8x128xf32>
    %cst_11 = arith.constant 0.000000e+00 : f32
    %13 = vector.broadcast %cst_11 : f32 to vector<8x128xf32>
    %14 = arith.maximumf %12, %13 : vector<8x128xf32>
    %c0_12 = arith.constant 0 : index
    %c0_13 = arith.constant 0 : index
    %15 = vector.load %arg6[%c0_12, %c0_13] : memref<1x128xf32, #tpu.memory_space<vmem>>, vector<1x128xf32>
    %cst_14 = arith.constant dense<0.000000e+00> : vector<1x8xf32>
    %16 = tpu.matmul %15, %14, %cst_14 {dimension_numbers = #tpu.dot_dimension_numbers<[1], [1], [0], [0], [0, 0, 1, 0], [], []>} : vector<1x128xf32>, vector<8x128xf32>, vector<1x8xf32> -> vector<1x8xf32>
    %c0_15 = arith.constant 0 : index
    %c0_16 = arith.constant 0 : index
    %17 = vector.load %arg7[%c0_15, %c0_16] : memref<1x1xf32, #tpu.memory_space<vmem>>, vector<1x1xf32>
    %18 = vector.broadcast %17 : vector<1x1xf32> to vector<1x8xf32>
    %19 = arith.addf %16, %18 : vector<1x8xf32>
    %20 = vector.shape_cast %19 : vector<1x8xf32> to vector<1x1x8xf32>
    %c0_17 = arith.constant 0 : index
    %c0_18 = arith.constant 0 : index
    %c0_19 = arith.constant 0 : index
    %21 = vector.load %arg8[%c0_17, %c0_18, %c0_19] : memref<1x1x8xf32, #tpu.memory_space<vmem>>, vector<1x1x8xf32>
    tpu.vector_store %arg8[%c0_17, %c0_18, %c0_19], %20 {strides = array<i32>} : memref<1x1x8xf32, #tpu.memory_space<vmem>>, vector<1x1x8xf32>,
    return
  }
  func.func @transform_0(%arg0: i32) -> (i32, i32) {
    %c0_i32 = arith.constant 0 : i32
    %c0_i32_0 = arith.constant 0 : i32
    return %arg0, %c0_i32 : i32, i32
  }
  func.func @transform_1(%arg0: i32) -> (i32, i32) {
    %c0_i32 = arith.constant 0 : i32
    %c0_i32_0 = arith.constant 0 : i32
    %c0_i32_1 = arith.constant 0 : i32
    return %c0_i32, %c0_i32_0 : i32, i32
  }
  func.func @transform_2(%arg0: i32) -> (i32, i32) {
    %c0_i32 = arith.constant 0 : i32
    %c0_i32_0 = arith.constant 0 : i32
    %c0_i32_1 = arith.constant 0 : i32
    return %c0_i32, %c0_i32_0 : i32, i32
  }
  func.func @transform_3(%arg0: i32) -> (i32, i32) {
    %c0_i32 = arith.constant 0 : i32
    %c0_i32_0 = arith.constant 0 : i32
    %c0_i32_1 = arith.constant 0 : i32
    return %c0_i32, %c0_i32_0 : i32, i32
  }
  func.func @transform_4(%arg0: i32) -> (i32, i32) {
    %c0_i32 = arith.constant 0 : i32
    %c0_i32_0 = arith.constant 0 : i32
    %c0_i32_1 = arith.constant 0 : i32
    return %c0_i32, %c0_i32_0 : i32, i32
  }
  func.func @transform_5(%arg0: i32) -> (i32, i32) {
    %c0_i32 = arith.constant 0 : i32
    %c0_i32_0 = arith.constant 0 : i32
    %c0_i32_1 = arith.constant 0 : i32
    return %c0_i32, %c0_i32_0 : i32, i32
  }
  func.func @transform_6(%arg0: i32) -> (i32, i32) {
    %c0_i32 = arith.constant 0 : i32
    %c0_i32_0 = arith.constant 0 : i32
    %c0_i32_1 = arith.constant 0 : i32
    return %c0_i32, %c0_i32_0 : i32, i32
  }
  func.func @transform_7(%arg0: i32) -> (i32, i32, i32) {
    %c0_i32 = arith.constant 0 : i32
    %c0_i32_0 = arith.constant 0 : i32
    %c0_i32_1 = arith.constant 0 : i32
    return %arg0, %c0_i32, %c0_i32_0 : i32, i32, i32
  }
}

</mosaic_0001>

<llo_original>
// kernel: custom_critic_forward.1
$region0: #{custom_critic_forward.1}
  #allocation0 [shape = 'u32[]', space=smem, size = 0x4, offset = 0x4, fixed_abs, tag = 'smem constant byte address 0x4 - core index']
  #allocation1 [shape = 'u32[144,128]{1,0:T(1,128)}', space=vmem, size = 0x12000, scoped, tag = 'internal scratch']
  #allocation2 [shape = 'f32[1,1]{1,0:T(1,128)S(1)}', space=vmem, size = 0x200, scoped, tag = 'scoped memory for custom_critic_forward.1']
  %s0 = inlined_call_operand.hbm [shape: f32[8,16], index: 0, kind: input, shape index: {}]
  %s1 = inlined_call_operand.hbm [shape: f32[16,128], index: 1, kind: input, shape index: {}]
  %s2 = inlined_call_operand.hbm [shape: f32[1,128], index: 2, kind: input, shape index: {}]
  %s3 = inlined_call_operand.hbm [shape: f32[128,128], index: 3, kind: input, shape index: {}]
  %s4 = inlined_call_operand.hbm [shape: f32[1,128], index: 4, kind: input, shape index: {}]
  %s5 = inlined_call_operand.hbm [shape: f32[1,128], index: 5, kind: input, shape index: {}]
  %s6 = inlined_call_operand.<no memory space> [shape: f32[1,1], index: 6, kind: input, shape index: {}]
  %s7 = inlined_call_operand.hbm [shape: f32[1,1,8], index: 7, kind: output, shape index: {}]
  %s8 = sld [smem:[#allocation0]]
  $region62: #{custom_critic_forward.1} parent=0
    _
  %s10 = ssub.s32 1, %s8
  %s11 = scalar_select 0, %s10, %s8
  %v12 = vstv %s6
  %13 = vst [vmem:[#allocation2] sm:$0x1] %v12
  $region1: #{custom_critic_forward.1} parent=0
    #allocation3 [shape = 'u8[4096]{0}', space=vmem, size = 0x1000, scoped, tag = 'input window, operand 0, single buffered']
    #allocation4 [shape = 's32[1]{0}', space=sflag, size = 0x4, scoped, tag = 'scoped memory for custom_critic_forward.1']
    #allocation5 [shape = 's32[1]{0}', space=sflag, size = 0x4, scoped, tag = 'scoped memory for custom_critic_forward.1']
    #allocation6 [shape = 'u8[8192]{0}', space=vmem, size = 0x2000, scoped, tag = 'input window, operand 1, single buffered']
    #allocation7 [shape = 's32[1]{0}', space=sflag, size = 0x4, scoped, tag = 'scoped memory for custom_critic_forward.1']
    #allocation8 [shape = 'u8[512]{0}', space=vmem, size = 0x400, scoped, tag = 'input window, operand 2, single buffered']
    #allocation9 [shape = 'u8[65536]{0}', space=vmem, size = 0x10000, scoped, tag = 'input window, operand 3, single buffered']
    #allocation10 [shape = 's32[1]{0}', space=sflag, size = 0x4, scoped, tag = 'scoped memory for custom_critic_forward.1']
    #allocation11 [shape = 'u8[512]{0}', space=vmem, size = 0x400, scoped, tag = 'input window, operand 4, single buffered']
    #allocation12 [shape = 'u8[512]{0}', space=vmem, size = 0x400, scoped, tag = 'input window, operand 5, single buffered']
    #allocation13 [shape = 's32[1]{0}', space=sflag, size = 0x4, scoped, tag = 'scoped memory for custom_critic_forward.1']
    #allocation14 [shape = 'u8[512]{0}', space=vmem, size = 0x400, scoped, tag = 'output window, operand 0, single buffered']
    %14 = vsyncpa [#allocation4], 0
    %15 = vsyncpa [#allocation7], 0
    %16 = vsyncpa [#allocation10], 0
    %17 = vsyncpa [#allocation13], 0
    %18 = vsyncpa [#allocation5], 0
    // Predicated region
    $region2: #{custom_critic_forward.1} parent=1 // pred_check
      _
    $region3: #{custom_critic_forward.1} parent=1 // pred_check_branch
      %20 = sbr.rel (0) target = $region5
    $region4: #{custom_critic_forward.1} parent=1 // pred_region
      %s22 = ssub.s32 128, 128
      %23 = vsyncadd [#allocation4], %s22
      %s25 = sshll.u32 [#allocation3], 4
      %s26 = int_to_ptr.vmem [resolvable:$true] %s25
      %28 = dma.hbm_to_vmem [thread:$0]  %s0, 128, %s26, [#allocation4]
    $region5: #{custom_critic_forward.1} parent=1 // pred_fallthru
      _
    // Predicated region
    $region6: #{custom_critic_forward.1} parent=1 // pred_check
      _
    $region7: #{custom_critic_forward.1} parent=1 // pred_check_branch
      %30 = sbr.rel (0) target = $region9
    $region8: #{custom_critic_forward.1} parent=1 // pred_region
      %s32 = ssub.s32 256, 256
      %33 = vsyncadd [#allocation7], %s32
      %s34 = sshll.u32 [#allocation6], 4
      %s35 = int_to_ptr.vmem [resolvable:$true] %s34
      %40 = dma.hbm_to_vmem [thread:$0]  %s1, 256, %s35, [#allocation7], 128, 128, 8
    $region9: #{custom_critic_forward.1} parent=1 // pred_fallthru
      _
    // Predicated region
    $region10: #{custom_critic_forward.1} parent=1 // pred_check
      _
    $region11: #{custom_critic_forward.1} parent=1 // pred_check_branch
      %42 = sbr.rel (0) target = $region13
    $region12: #{custom_critic_forward.1} parent=1 // pred_region
      %s44 = ssub.s32 16, 16
      %45 = vsyncadd [#allocation7], %s44
      %s47 = sshll.u32 [#allocation8], 4
      %s48 = int_to_ptr.vmem [resolvable:$true] %s47
      %50 = dma.hbm_to_vmem [thread:$0]  %s2, 16, %s48, [#allocation7]
    $region13: #{custom_critic_forward.1} parent=1 // pred_fallthru
      _
    // Predicated region
    $region14: #{custom_critic_forward.1} parent=1 // pred_check
      _
    $region15: #{custom_critic_forward.1} parent=1 // pred_check_branch
      %52 = sbr.rel (0) target = $region17
    $region16: #{custom_critic_forward.1} parent=1 // pred_region
      %s54 = ssub.s32 2048, 2048
      %55 = vsyncadd [#allocation10], %s54
      %s56 = sshll.u32 [#allocation9], 4
      %s57 = int_to_ptr.vmem [resolvable:$true] %s56
      %62 = dma.hbm_to_vmem [thread:$0]  %s3, 2048, %s57, [#allocation10], 128, 128, 8
    $region17: #{custom_critic_forward.1} parent=1 // pred_fallthru
      _
    // Predicated region
    $region18: #{custom_critic_forward.1} parent=1 // pred_check
      _
    $region19: #{custom_critic_forward.1} parent=1 // pred_check_branch
      %64 = sbr.rel (0) target = $region21
    $region20: #{custom_critic_forward.1} parent=1 // pred_region
      %s66 = ssub.s32 16, 16
      %67 = vsyncadd [#allocation10], %s66
      %s69 = sshll.u32 [#allocation11], 4
      %s70 = int_to_ptr.vmem [resolvable:$true] %s69
      %72 = dma.hbm_to_vmem [thread:$0]  %s4, 16, %s70, [#allocation10]
    $region21: #{custom_critic_forward.1} parent=1 // pred_fallthru
      _
    // Predicated region
    $region22: #{custom_critic_forward.1} parent=1 // pred_check
      _
    $region23: #{custom_critic_forward.1} parent=1 // pred_check_branch
      %74 = sbr.rel (0) target = $region25
    $region24: #{custom_critic_forward.1} parent=1 // pred_region
      %s76 = ssub.s32 16, 16
      %77 = vsyncadd [#allocation13], %s76
      %s79 = sshll.u32 [#allocation12], 4
      %s80 = int_to_ptr.vmem [resolvable:$true] %s79
      %82 = dma.hbm_to_vmem [thread:$0]  %s5, 16, %s80, [#allocation13]
    $region25: #{custom_critic_forward.1} parent=1 // pred_fallthru
      _
    // Predicated region
    $region26: #{custom_critic_forward.1} parent=1 // pred_check
      _
    $region27: #{custom_critic_forward.1} parent=1 // pred_check_branch
      %84 = sbr.rel (0) target = $region29
    $region28: #{custom_critic_forward.1} parent=1 // pred_region
      _
    $region29: #{custom_critic_forward.1} parent=1 // pred_fallthru
      _
    // Predicated region
    $region30: #{custom_critic_forward.1} parent=1 // pred_check
      _
    $region31: #{custom_critic_forward.1} parent=1 // pred_check_branch
      %86 = sbr.rel (0) target = $region33
    $region32: #{custom_critic_forward.1} parent=1 // pred_region
      %87 = dma.done [#allocation4], 128
    $region33: #{custom_critic_forward.1} parent=1 // pred_fallthru
      _
    // Predicated region
    $region34: #{custom_critic_forward.1} parent=1 // pred_check
      _
    $region35: #{custom_critic_forward.1} parent=1 // pred_check_branch
      %89 = sbr.rel (0) target = $region37
    $region36: #{custom_critic_forward.1} parent=1 // pred_region
      %90 = dma.done [#allocation7], 256
    $region37: #{custom_critic_forward.1} parent=1 // pred_fallthru
      _
    // Predicated region
    $region38: #{custom_critic_forward.1} parent=1 // pred_check
      _
    $region39: #{custom_critic_forward.1} parent=1 // pred_check_branch
      %92 = sbr.rel (0) target = $region41
    $region40: #{custom_critic_forward.1} parent=1 // pred_region
      %93 = dma.done [#allocation7], 16
    $region41: #{custom_critic_forward.1} parent=1 // pred_fallthru
      _
    // Predicated region
    $region42: #{custom_critic_forward.1} parent=1 // pred_check
      _
    $region43: #{custom_critic_forward.1} parent=1 // pred_check_branch
      %95 = sbr.rel (0) target = $region45
    $region44: #{custom_critic_forward.1} parent=1 // pred_region
      %96 = dma.done [#allocation10], 2048
    $region45: #{custom_critic_forward.1} parent=1 // pred_fallthru
      _
    // Predicated region
    $region46: #{custom_critic_forward.1} parent=1 // pred_check
      _
    $region47: #{custom_critic_forward.1} parent=1 // pred_check_branch
      %98 = sbr.rel (0) target = $region49
    $region48: #{custom_critic_forward.1} parent=1 // pred_region
      %99 = dma.done [#allocation10], 16
    $region49: #{custom_critic_forward.1} parent=1 // pred_fallthru
      _
    // Predicated region
    $region50: #{custom_critic_forward.1} parent=1 // pred_check
      _
    $region51: #{custom_critic_forward.1} parent=1 // pred_check_branch
      %101 = sbr.rel (0) target = $region53
    $region52: #{custom_critic_forward.1} parent=1 // pred_region
      %102 = dma.done [#allocation13], 16
    $region53: #{custom_critic_forward.1} parent=1 // pred_fallthru
      _
    %v103 = vld [vmem:[#allocation3] sm:$0xff]
    %v104 = vld [vmem:[#allocation6] sm:$0xff]
    %v105 = vld [vmem:[#allocation6 + $0x8] sm:$0xff]
    %v106 = vld [vmem:[#allocation8] sm:$0x1]
    %v108 = vlaneseq
    %v109 = vshrl.u32 %v108, 7
    %v110 = vsub.s32 0, %v109
    %v111 = vrot.slane %v106, %v110
    %vm113 = vcmask 130048
    %v115 = vsel %vm113, %v103, 0
    %117 = vmatprep.subr.mxu0 0.0
    %118 = vmatpush1.msra.mxu0 %v104
    %119 = vmatprep.subr.mxu0 0.0
    %120 = vmatpush1.msra.mxu0 %v105
    %121 = vmatprep.subr.mxu0 0.0
    %122 = vmatpush1.msra.mxu0 0.0
    %123 = vmatprep.subr.mxu0 0.0
    %124 = vmatpush1.msra.mxu0 0.0
    %125 = vmatprep.subr.mxu0 0.0
    %126 = vmatpush1.msra.mxu0 0.0
    %127 = vmatprep.subr.mxu0 0.0
    %128 = vmatpush1.msra.mxu0 0.0
    %129 = vmatprep.subr.mxu0 0.0
    %130 = vmatpush1.msra.mxu0 0.0
    %131 = vmatprep.subr.mxu0 0.0
    %132 = vmatpush1.msra.mxu0 0.0
    %133 = vmatprep.subr.mxu0 0.0
    %134 = vmatpush1.msra.mxu0 0.0
    %135 = vmatprep.subr.mxu0 0.0
    %136 = vmatpush1.msra.mxu0 0.0
    %137 = vmatprep.subr.mxu0 0.0
    %138 = vmatpush1.msra.mxu0 0.0
    %139 = vmatprep.subr.mxu0 0.0
    %140 = vmatpush1.msra.mxu0 0.0
    %141 = vmatprep.subr.mxu0 0.0
    %142 = vmatpush1.msra.mxu0 0.0
    %143 = vmatprep.subr.mxu0 0.0
    %144 = vmatpush1.msra.mxu0 0.0
    %145 = vmatprep.subr.mxu0 0.0
    %146 = vmatpush1.msra.mxu0 0.0
    %147 = vmatprep.subr.mxu0 0.0
    %148 = vmatpush1.msra.mxu0 0.0
    %149 = vmatprep.subr.mxu0 0.0
    %150 = vmatpush1.msra.mxu0 0.0
    %151 = vmatprep.subr.mxu0 0.0
    %152 = vmatpush1.msra.mxu0 0.0
    %153 = vmatprep.subr.mxu0 0.0
    %154 = vmatpush1.msra.mxu0 0.0
    %155 = vmatprep.subr.mxu0 0.0
    %156 = vmatpush1.msra.mxu0 0.0
    %157 = vmatprep.subr.mxu0 0.0
    %158 = vmatpush1.msra.mxu0 0.0
    %159 = vmatprep.subr.mxu0 0.0
    %160 = vmatpush1.msra.mxu0 0.0
    %161 = vmatprep.subr.mxu0 0.0
    %162 = vmatpush1.msra.mxu0 0.0
    %163 = vmatprep.subr.mxu0 0.0
    %164 = vmatpush1.msra.mxu0 0.0
    %165 = vmatprep.subr.mxu0 0.0
    %166 = vmatpush1.msra.mxu0 0.0
    %167 = vmatprep.subr.mxu0 0.0
    %168 = vmatpush1.msra.mxu0 0.0
    %169 = vmatprep.subr.mxu0 0.0
    %170 = vmatpush1.msra.mxu0 0.0
    %171 = vmatprep.subr.mxu0 0.0
    %172 = vmatpush1.msra.mxu0 0.0
    %173 = vmatprep.subr.mxu0 0.0
    %174 = vmatpush1.msra.mxu0 0.0
    %175 = vmatprep.subr.mxu0 0.0
    %176 = vmatpush1.msra.mxu0 0.0
    %177 = vmatprep.subr.mxu0 0.0
    %178 = vmatpush1.msra.mxu0 0.0
    %179 = vmatprep.subr.mxu0 0.0
    %180 = vmatpush1.msra.mxu0 0.0
    %181 = vmatprep.mubr.f32.mxu0 0.0
    %182 = vmatmul.mubr.f32.gmra.mrb[0].mxu0 %v115
    %v183 = vpop.f32.mrb[0].mxu0
    %v184 = vadd.f32 %v111, %v183
    %v185 = vpop.f32.mrb[0].mxu0
    %186 = vdwg.mxu0
    %v187 = vmax.f32 %v184, 0.0
    %v188 = vld [vmem:[#allocation9] sm:$0xff]
    %v189 = vld [vmem:[#allocation9 + $0x8] sm:$0xff]
    %v190 = vld [vmem:[#allocation9 + $0x10] sm:$0xff]
    %v191 = vld [vmem:[#allocation9 + $0x18] sm:$0xff]
    %v192 = vld [vmem:[#allocation9 + $0x20] sm:$0xff]
    %v193 = vld [vmem:[#allocation9 + $0x28] sm:$0xff]
    %v194 = vld [vmem:[#allocation9 + $0x30] sm:$0xff]
    %v195 = vld [vmem:[#allocation9 + $0x38] sm:$0xff]
    %v196 = vld [vmem:[#allocation9 + $0x40] sm:$0xff]
    %v197 = vld [vmem:[#allocation9 + $0x48] sm:$0xff]
    %v198 = vld [vmem:[#allocation9 + $0x50] sm:$0xff]
    %v199 = vld [vmem:[#allocation9 + $0x58] sm:$0xff]
    %v200 = vld [vmem:[#allocation9 + $0x60] sm:$0xff]
    %v201 = vld [vmem:[#allocation9 + $0x68] sm:$0xff]
    %v202 = vld [vmem:[#allocation9 + $0x70] sm:$0xff]
    %v203 = vld [vmem:[#allocation9 + $0x78] sm:$0xff]
    %v204 = vld [vmem:[#allocation11] sm:$0x1]
    %v206 = vlaneseq
    %v207 = vshrl.u32 %v206, 7
    %v208 = vsub.s32 0, %v207
    %v209 = vrot.slane %v204, %v208
    %211 = vmatprep.subr.mxu0 0.0
    %212 = vmatpush1.msra.mxu0 %v188
    %213 = vmatprep.subr.mxu0 0.0
    %214 = vmatpush1.msra.mxu0 %v189
    %215 = vmatprep.subr.mxu0 0.0
    %216 = vmatpush1.msra.mxu0 %v190
    %217 = vmatprep.subr.mxu0 0.0
    %218 = vmatpush1.msra.mxu0 %v191
    %219 = vmatprep.subr.mxu0 0.0
    %220 = vmatpush1.msra.mxu0 %v192
    %221 = vmatprep.subr.mxu0 0.0
    %222 = vmatpush1.msra.mxu0 %v193
    %223 = vmatprep.subr.mxu0 0.0
    %224 = vmatpush1.msra.mxu0 %v194
    %225 = vmatprep.subr.mxu0 0.0
    %226 = vmatpush1.msra.mxu0 %v195
    %227 = vmatprep.subr.mxu0 0.0
    %228 = vmatpush1.msra.mxu0 %v196
    %229 = vmatprep.subr.mxu0 0.0
    %230 = vmatpush1.msra.mxu0 %v197
    %231 = vmatprep.subr.mxu0 0.0
    %232 = vmatpush1.msra.mxu0 %v198
    %233 = vmatprep.subr.mxu0 0.0
    %234 = vmatpush1.msra.mxu0 %v199
    %235 = vmatprep.subr.mxu0 0.0
    %236 = vmatpush1.msra.mxu0 %v200
    %237 = vmatprep.subr.mxu0 0.0
    %238 = vmatpush1.msra.mxu0 %v201
    %239 = vmatprep.subr.mxu0 0.0
    %240 = vmatpush1.msra.mxu0 %v202
    %241 = vmatprep.subr.mxu0 0.0
    %242 = vmatpush1.msra.mxu0 %v203
    %243 = vmatprep.subr.mxu0 0.0
    %244 = vmatpush1.msra.mxu0 0.0
    %245 = vmatprep.subr.mxu0 0.0
    %246 = vmatpush1.msra.mxu0 0.0
    %247 = vmatprep.subr.mxu0 0.0
    %248 = vmatpush1.msra.mxu0 0.0
    %249 = vmatprep.subr.mxu0 0.0
    %250 = vmatpush1.msra.mxu0 0.0
    %251 = vmatprep.subr.mxu0 0.0
    %252 = vmatpush1.msra.mxu0 0.0
    %253 = vmatprep.subr.mxu0 0.0
    %254 = vmatpush1.msra.mxu0 0.0
    %255 = vmatprep.subr.mxu0 0.0
    %256 = vmatpush1.msra.mxu0 0.0
    %257 = vmatprep.subr.mxu0 0.0
    %258 = vmatpush1.msra.mxu0 0.0
    %259 = vmatprep.subr.mxu0 0.0
    %260 = vmatpush1.msra.mxu0 0.0
    %261 = vmatprep.subr.mxu0 0.0
    %262 = vmatpush1.msra.mxu0 0.0
    %263 = vmatprep.subr.mxu0 0.0
    %264 = vmatpush1.msra.mxu0 0.0
    %265 = vmatprep.subr.mxu0 0.0
    %266 = vmatpush1.msra.mxu0 0.0
    %267 = vmatprep.subr.mxu0 0.0
    %268 = vmatpush1.msra.mxu0 0.0
    %269 = vmatprep.subr.mxu0 0.0
    %270 = vmatpush1.msra.mxu0 0.0
    %271 = vmatprep.subr.mxu0 0.0
    %272 = vmatpush1.msra.mxu0 0.0
    %273 = vmatprep.subr.mxu0 0.0
    %274 = vmatpush1.msra.mxu0 0.0
    %275 = vmatprep.mubr.f32.mxu0 0.0
    %276 = vmatmul.mubr.f32.gmra.mrb[0].mxu0 %v187
    %v277 = vpop.f32.mrb[0].mxu0
    %v278 = vadd.f32 %v209, %v277
    %v279 = vpop.f32.mrb[0].mxu0
    %280 = vdwg.mxu0
    %v281 = vmax.f32 %v278, 0.0
    %v282 = vld [vmem:[#allocation12] sm:$0x1]
    %v283 = vld [vmem:[#allocation2] sm:$0x1]
    %285 = vset.pattern.permute.xlu0 0
    %286 = vperm.xlu0 %285, %v283
    %v287 = vpop.permute.xlu0 %286
    %v289 = vlaneseq
    %v290 = vshrl.u32 %v289, 7
    %v291 = vsub.s32 0, %v290
    %v292 = vrot.slane %v287, %v291
    %293 = vmatprep.subr.mxu0 0.0
    %294 = vmatpush1.xpose.msra.mxu0 %v281
    %295 = vmatprep.subr.mxu0 0.0
    %296 = vmatpush1.xpose.msra.mxu0 0.0
    %297 = vmatprep.subr.mxu0 0.0
    %298 = vmatpush1.xpose.msra.mxu0 0.0
    %299 = vmatprep.subr.mxu0 0.0
    %300 = vmatpush1.xpose.msra.mxu0 0.0
    %301 = vmatprep.subr.mxu0 0.0
    %302 = vmatpush1.xpose.msra.mxu0 0.0
    %303 = vmatprep.subr.mxu0 0.0
    %304 = vmatpush1.xpose.msra.mxu0 0.0
    %305 = vmatprep.subr.mxu0 0.0
    %306 = vmatpush1.xpose.msra.mxu0 0.0
    %307 = vmatprep.subr.mxu0 0.0
    %308 = vmatpush1.xpose.msra.mxu0 0.0
    %309 = vmatprep.subr.mxu0 0.0
    %310 = vmatpush1.xpose.msra.mxu0 0.0
    %311 = vmatprep.subr.mxu0 0.0
    %312 = vmatpush1.xpose.msra.mxu0 0.0
    %313 = vmatprep.subr.mxu0 0.0
    %314 = vmatpush1.xpose.msra.mxu0 0.0
    %315 = vmatprep.subr.mxu0 0.0
    %316 = vmatpush1.xpose.msra.mxu0 0.0
    %317 = vmatprep.subr.mxu0 0.0
    %318 = vmatpush1.xpose.msra.mxu0 0.0
    %319 = vmatprep.subr.mxu0 0.0
    %320 = vmatpush1.xpose.msra.mxu0 0.0
    %321 = vmatprep.subr.mxu0 0.0
    %322 = vmatpush1.xpose.msra.mxu0 0.0
    %323 = vmatprep.subr.mxu0 0.0
    %324 = vmatpush1.xpose.msra.mxu0 0.0
    %325 = vmatprep.subr.mxu0 0.0
    %326 = vmatpush1.xpose.msra.mxu0 0.0
    %327 = vmatprep.subr.mxu0 0.0
    %328 = vmatpush1.xpose.msra.mxu0 0.0
    %329 = vmatprep.subr.mxu0 0.0
    %330 = vmatpush1.xpose.msra.mxu0 0.0
    %331 = vmatprep.subr.mxu0 0.0
    %332 = vmatpush1.xpose.msra.mxu0 0.0
    %333 = vmatprep.subr.mxu0 0.0
    %334 = vmatpush1.xpose.msra.mxu0 0.0
    %335 = vmatprep.subr.mxu0 0.0
    %336 = vmatpush1.xpose.msra.mxu0 0.0
    %337 = vmatprep.subr.mxu0 0.0
    %338 = vmatpush1.xpose.msra.mxu0 0.0
    %339 = vmatprep.subr.mxu0 0.0
    %340 = vmatpush1.xpose.msra.mxu0 0.0
    %341 = vmatprep.subr.mxu0 0.0
    %342 = vmatpush1.xpose.msra.mxu0 0.0
    %343 = vmatprep.subr.mxu0 0.0
    %344 = vmatpush1.xpose.msra.mxu0 0.0
    %345 = vmatprep.subr.mxu0 0.0
    %346 = vmatpush1.xpose.msra.mxu0 0.0
    %347 = vmatprep.subr.mxu0 0.0
    %348 = vmatpush1.xpose.msra.mxu0 0.0
    %349 = vmatprep.subr.mxu0 0.0
    %350 = vmatpush1.xpose.msra.mxu0 0.0
    %351 = vmatprep.subr.mxu0 0.0
    %352 = vmatpush1.xpose.msra.mxu0 0.0
    %353 = vmatprep.subr.mxu0 0.0
    %354 = vmatpush1.xpose.msra.mxu0 0.0
    %355 = vmatprep.subr.mxu0 0.0
    %356 = vmatpush1.xpose.msra.mxu0 0.0
    %357 = vmatprep.mubr.f32.mxu0 0.0
    %358 = vmatmul.mubr.f32.gmra.mrb[0].mxu0 %v282
    %v359 = vpop.f32.mrb[0].mxu0
    %v360 = vadd.f32 %v292, %v359
    %v361 = vpop.f32.mrb[0].mxu0
    %362 = vdwg.mxu0
    %vm363 = vcmask 57344
    %364 = vst.msk [vmem:[#allocation14] sm:$0x1] %vm363, %v360
    // Predicated region
    $region54: #{custom_critic_forward.1} parent=1 // pred_check
      _
    $region55: #{custom_critic_forward.1} parent=1 // pred_check_branch
      %366 = sbr.rel (0) target = $region57
    $region56: #{custom_critic_forward.1} parent=1 // pred_region
      %s368 = ssub.s32 16, 16
      %369 = vsyncadd [#allocation5], %s368
      %s371 = sshll.u32 [#allocation14], 4
      %s372 = int_to_ptr.vmem [resolvable:$true] %s371
      %374 = dma.vmem_to_hbm [thread:$0]  %s372, 16, %s7, [#allocation5]
    $region57: #{custom_critic_forward.1} parent=1 // pred_fallthru
      _
    // Predicated region
    $region58: #{custom_critic_forward.1} parent=1 // pred_check
      _
    $region59: #{custom_critic_forward.1} parent=1 // pred_check_branch
      %376 = sbr.rel (0) target = $region61
    $region60: #{custom_critic_forward.1} parent=1 // pred_region
      %377 = dma.done [#allocation5], 16
    $region61: #{custom_critic_forward.1} parent=1 // pred_fallthru
      _
    %378 = vsyncpa [#allocation4], 1
    %379 = vsyncpa [#allocation7], 1
    %380 = vsyncpa [#allocation10], 1
    %381 = vsyncpa [#allocation13], 1
    %382 = vsyncpa [#allocation5], 1

</llo_original>
